<compile_context>
chip_gen: v6e
topology: v6e:2x2x1
jax: 0.10.0
libtpu: 0.0.40
codegen_flags: <defaults>
</compile_context>

<pallas_src>
import jax
import jax.numpy as jnp
from jax import lax
from jax.experimental import pallas as pl
from jax.experimental.pallas import tpu as pltpu

K = 5  # kernel_size


def _make_kernel(k, wp, cin):
    """Build the kernel body, closing over static geometry (kernel size, padded width, Cin)."""

    def kernel(x_ref, w_ref, scale_ref, shift_ref, o_ref, xcol_ref):
        # x_ref    : (Bblk, Cin, Lpad)   flattened (padded-stride) input + zero tail
        # w_ref    : (Cout, K*K*Cin)     im2col-ordered conv-equivalent weights (resident)
        # scale_ref: (Cout, 1)           folded BN scale
        # shift_ref: (Cout, 1)           folded conv-bias + BN shift
        # o_ref    : (Bblk, Cout, L)     L = Hp*Wp, lane-dense flattened output
        # xcol_ref : (K*K*Cin, L)        im2col staging scratch (written once, read once)
        n_b = o_ref.shape[0]
        l_out = o_ref.shape[2]

        w = w_ref[...]          # hoisted: loaded once per grid step
        scale = scale_ref[...]  # (Cout, 1) -> lane-broadcast in the epilogue
        shift = shift_ref[...]

        for b in range(n_b):    # static, small batch block
            # --- im2col staging: one lane-shifted row-block copy per tap ------------
            for kh in range(k):
                for kw in range(k):
                    t = kh * k + kw
                    s = kh * wp + kw
                    xcol_ref[t * cin:(t + 1) * cin, :] = x_ref[b, :, s:s + l_out]

            # --- one deep-contraction matmul on the MXU -----------------------------
            acc = jnp.dot(w, xcol_ref[...], preferred_element_type=jnp.float32)  # (Cout, L)

            # --- fused bias + BatchNorm(eval) + ReLU epilogue (lane-dense) ----------
            y = jnp.maximum(acc * scale + shift, 0.0)
            o_ref[b, :, :] = y.astype(o_ref.dtype)

    return kernel


def set_deconv_forward(x_nchw, w_pt, b, gamma, beta, run_mean, run_var, eps=1e-5):
    """Pallas implementation of set_deconv.forward (stride=1, batch_norm=True, act=ReLU)."""
    N, Cin, H, W = x_nchw.shape
    Cout = w_pt.shape[1]
    pad = (K - 1) // 2
    Hp, Wp = H + K - 1, W + K - 1
    L = Hp * Wp                              # flattened (padded-stride) output length
    Lpad = L + (K - 1) * (Wp + 1)            # head-room so every tap window stays in bounds
    KKC = K * K * Cin

    # ---- layout plumbing (stays NCHW; no transposes) --------------------------------
    xp = jnp.pad(x_nchw, ((0, 0), (0, 0), (pad, pad), (pad, pad)))        # (N,Cin,Hp,Wp)
    x_flat = xp.reshape(N, Cin, L).astype(jnp.float32)
    x_flat = jnp.pad(x_flat, ((0, 0), (0, 0), (0, Lpad - L)))             # (N,Cin,Lpad)

    # ConvTranspose2d(stride=1, pad=(K-1)//2) == "same" conv with spatially flipped kernel
    # and in/out channels swapped.  Build the im2col-ordered 2-D weight (Cout, K*K*Cin),
    # row order (kh, kw, ci) matching the staging buffer.
    w_conv = jnp.transpose(w_pt[:, :, ::-1, ::-1], (1, 0, 2, 3))          # (Cout,Cin,K,K)
    w2 = jnp.transpose(w_conv, (0, 2, 3, 1)).reshape(Cout, KKC).astype(jnp.float32)

    scale_bn = gamma / jnp.sqrt(run_var + eps)
    scale = scale_bn.reshape(Cout, 1).astype(jnp.float32)
    shift = (scale_bn * (b - run_mean) + beta).reshape(Cout, 1).astype(jnp.float32)

    # Batch block: amortize per-grid-step overhead, but keep >= 2 grid steps when possible
    # so both v7x TensorCores get work (v5e/v6e single-TC unaffected).
    Bblk = 1
    for d in (8, 4, 2):
        if N % d == 0 and N // d >= 2:
            Bblk = d
            break

    # Per-step VMEM footprint is tiny (<1 MiB: Bblk*Cin*Lpad input, Cout*L output, K*K*Cin*L
    # staging scratch), so the default scoped-VMEM limit is fine even on v7x (64 MiB).
    kernel = _make_kernel(K, Wp, Cin)
    out_flat = pl.pallas_call(
        kernel,
        out_shape=jax.ShapeDtypeStruct((N, Cout, L), x_nchw.dtype),
        grid_spec=pltpu.PrefetchScalarGridSpec(
            num_scalar_prefetch=0,
            grid=(N // Bblk,),
            in_specs=[
                pl.BlockSpec((Bblk, Cin, Lpad), lambda i: (i, 0, 0)),
                pl.BlockSpec((Cout, KKC), lambda i: (0, 0)),
                pl.BlockSpec((Cout, 1), lambda i: (0, 0)),
                pl.BlockSpec((Cout, 1), lambda i: (0, 0)),
            ],
            out_specs=pl.BlockSpec((Bblk, Cout, L), lambda i: (i, 0, 0)),
            scratch_shapes=[pltpu.VMEM((KKC, L), jnp.float32)],
        ),
        compiler_params=pltpu.CompilerParams(dimension_semantics=("parallel",)),
    )(x_flat, w2, scale, shift)

    # Strip the padded-stride over-compute back to the valid H x W block (NCHW).
    return out_flat.reshape(N, Cout, Hp, Wp)[:, :, :H, :W]


def _reference(x_nchw, w_pt, b, gamma, beta, run_mean, run_var, eps=1e-5):
    """Pure-JAX reference of the same math (for a correctness check)."""
    pad = (K - 1) // 2
    w_conv = jnp.transpose(w_pt[:, :, ::-1, ::-1], (1, 0, 2, 3))          # OIHW
    z = lax.conv_general_dilated(
        x_nchw, w_conv, window_strides=(1, 1), padding=[(pad, pad), (pad, pad)],
        dimension_numbers=("NCHW", "OIHW", "NCHW"))
    scale_bn = (gamma / jnp.sqrt(run_var + eps)).reshape(1, -1, 1, 1)
    y = scale_bn * (z + b.reshape(1, -1, 1, 1) - run_mean.reshape(1, -1, 1, 1)) \
        + beta.reshape(1, -1, 1, 1)
    return jnp.maximum(y, 0.0)


if __name__ == "__main__":
    # Small, module-consistent shapes: batch=2, repr_size_in=4, repr_size_out=8, spatial=16
    N, Cin, Cout, H, W = 2, 4, 8, 16, 16

    key = jax.random.PRNGKey(0)
    k_x, k_w, k_b, k_g, k_be, k_m, k_v = jax.random.split(key, 7)

    x = jax.random.normal(k_x, (N, Cin, H, W), dtype=jnp.float32)
    # ConvTranspose2d parameter shapes: weight (Cin, Cout, K, K), bias (Cout,)
    w_pt = 0.1 * jax.random.normal(k_w, (Cin, Cout, K, K), dtype=jnp.float32)
    bias = 0.1 * jax.random.normal(k_b, (Cout,), dtype=jnp.float32)
    # BatchNorm2d (eval-mode) parameters / running stats
    gamma = 1.0 + 0.1 * jax.random.normal(k_g, (Cout,), dtype=jnp.float32)
    beta = 0.1 * jax.random.normal(k_be, (Cout,), dtype=jnp.float32)
    run_mean = 0.1 * jax.random.normal(k_m, (Cout,), dtype=jnp.float32)
    run_var = jnp.abs(jax.random.normal(k_v, (Cout,), dtype=jnp.float32)) + 0.5

    out = set_deconv_forward(x, w_pt, bias, gamma, beta, run_mean, run_var)
    out = jax.block_until_ready(out)

    ref = _reference(x, w_pt, bias, gamma, beta, run_mean, run_var)
    assert out.shape == (N, Cout, H, W), out.shape
    assert jnp.allclose(out, ref, atol=1e-4, rtol=1e-4), float(jnp.max(jnp.abs(out - ref)))

    print("KERNEL_OK")
</pallas_src>

<mosaic_0001>
module attributes {stable_mosaic.version = 11 : i64} {
  func.func @kernel(%arg0: i32, %arg1: memref<1x4x484xf32, #tpu.memory_space<vmem>>, %arg2: memref<8x100xf32, #tpu.memory_space<vmem>>, %arg3: memref<8x1xf32, #tpu.memory_space<vmem>>, %arg4: memref<8x1xf32, #tpu.memory_space<vmem>>, %arg5: memref<1x8x400xf32, #tpu.memory_space<vmem>>, %arg6: memref<100x400xf32, #tpu.memory_space<vmem>>) attributes {dimension_semantics = [#tpu.dimension_semantics<parallel>], iteration_bounds = array<i64: 2>, scalar_prefetch = 0 : i64, scratch_operands = 1 : i64, tpu.core_type = #tpu.core_type<tc>, window_params = [{transform_indices = @transform_0, window_bounds = array<i64: 1, 4, 484>}, {pipeline_mode = #tpu.pipeline_mode<synchronous>, transform_indices = @transform_1, window_bounds = array<i64: 8, 100>}, {pipeline_mode = #tpu.pipeline_mode<synchronous>, transform_indices = @transform_2, window_bounds = array<i64: 8, 1>}, {pipeline_mode = #tpu.pipeline_mode<synchronous>, transform_indices = @transform_3, window_bounds = array<i64: 8, 1>}, {transform_indices = @transform_4, window_bounds = array<i64: 1, 8, 400>}]} {
    %c0 = arith.constant 0 : index
    %c0_0 = arith.constant 0 : index
    %0 = vector.load %arg2[%c0, %c0_0] : memref<8x100xf32, #tpu.memory_space<vmem>>, vector<8x100xf32>
    %c0_1 = arith.constant 0 : index
    %c0_2 = arith.constant 0 : index
    %1 = vector.load %arg3[%c0_1, %c0_2] : memref<8x1xf32, #tpu.memory_space<vmem>>, vector<8x1xf32>
    %c0_3 = arith.constant 0 : index
    %c0_4 = arith.constant 0 : index
    %2 = vector.load %arg4[%c0_3, %c0_4] : memref<8x1xf32, #tpu.memory_space<vmem>>, vector<8x1xf32>
    %c0_5 = arith.constant 0 : index
    %c0_6 = arith.constant 0 : index
    %c0_7 = arith.constant 0 : index
    %3 = vector.load %arg1[%c0_5, %c0_6, %c0_7] : memref<1x4x484xf32, #tpu.memory_space<vmem>>, vector<1x4x400xf32>
    %4 = vector.shape_cast %3 : vector<1x4x400xf32> to vector<4x400xf32>
    %c0_8 = arith.constant 0 : index
    %c0_9 = arith.constant 0 : index
    %5 = vector.load %arg6[%c0_8, %c0_9] : memref<100x400xf32, #tpu.memory_space<vmem>>, vector<4x400xf32>
    tpu.vector_store %arg6[%c0_8, %c0_9], %4 {strides = array<i32>} : memref<100x400xf32, #tpu.memory_space<vmem>>, vector<4x400xf32>,
    %c0_10 = arith.constant 0 : index
    %c0_11 = arith.constant 0 : index
    %c1 = arith.constant 1 : index
    %6 = vector.load %arg1[%c0_10, %c0_11, %c1] : memref<1x4x484xf32, #tpu.memory_space<vmem>>, vector<1x4x400xf32>
    %7 = vector.shape_cast %6 : vector<1x4x400xf32> to vector<4x400xf32>
    %c4 = arith.constant 4 : index
    %c0_12 = arith.constant 0 : index
    %8 = vector.load %arg6[%c4, %c0_12] : memref<100x400xf32, #tpu.memory_space<vmem>>, vector<4x400xf32>
    tpu.vector_store %arg6[%c4, %c0_12], %7 {strides = array<i32>} : memref<100x400xf32, #tpu.memory_space<vmem>>, vector<4x400xf32>,
    %c0_13 = arith.constant 0 : index
    %c0_14 = arith.constant 0 : index
    %c2 = arith.constant 2 : index
    %9 = vector.load %arg1[%c0_13, %c0_14, %c2] : memref<1x4x484xf32, #tpu.memory_space<vmem>>, vector<1x4x400xf32>
    %10 = vector.shape_cast %9 : vector<1x4x400xf32> to vector<4x400xf32>
    %c8 = arith.constant 8 : index
    %c0_15 = arith.constant 0 : index
    %11 = vector.load %arg6[%c8, %c0_15] : memref<100x400xf32, #tpu.memory_space<vmem>>, vector<4x400xf32>
    tpu.vector_store %arg6[%c8, %c0_15], %10 {strides = array<i32>} : memref<100x400xf32, #tpu.memory_space<vmem>>, vector<4x400xf32>,
    %c0_16 = arith.constant 0 : index
    %c0_17 = arith.constant 0 : index
    %c3 = arith.constant 3 : index
    %12 = vector.load %arg1[%c0_16, %c0_17, %c3] : memref<1x4x484xf32, #tpu.memory_space<vmem>>, vector<1x4x400xf32>
    %13 = vector.shape_cast %12 : vector<1x4x400xf32> to vector<4x400xf32>
    %c12 = arith.constant 12 : index
    %c0_18 = arith.constant 0 : index
    %14 = vector.load %arg6[%c12, %c0_18] : memref<100x400xf32, #tpu.memory_space<vmem>>, vector<4x400xf32>
    tpu.vector_store %arg6[%c12, %c0_18], %13 {strides = array<i32>} : memref<100x400xf32, #tpu.memory_space<vmem>>, vector<4x400xf32>,
    %c0_19 = arith.constant 0 : index
    %c0_20 = arith.constant 0 : index
    %c4_21 = arith.constant 4 : index
    %15 = vector.load %arg1[%c0_19, %c0_20, %c4_21] : memref<1x4x484xf32, #tpu.memory_space<vmem>>, vector<1x4x400xf32>
    %16 = vector.shape_cast %15 : vector<1x4x400xf32> to vector<4x400xf32>
    %c16 = arith.constant 16 : index
    %c0_22 = arith.constant 0 : index
    %17 = vector.load %arg6[%c16, %c0_22] : memref<100x400xf32, #tpu.memory_space<vmem>>, vector<4x400xf32>
    tpu.vector_store %arg6[%c16, %c0_22], %16 {strides = array<i32>} : memref<100x400xf32, #tpu.memory_space<vmem>>, vector<4x400xf32>,
    %c0_23 = arith.constant 0 : index
    %c0_24 = arith.constant 0 : index
    %c20 = arith.constant 20 : index
    %18 = vector.load %arg1[%c0_23, %c0_24, %c20] : memref<1x4x484xf32, #tpu.memory_space<vmem>>, vector<1x4x400xf32>
    %19 = vector.shape_cast %18 : vector<1x4x400xf32> to vector<4x400xf32>
    %c20_25 = arith.constant 20 : index
    %c0_26 = arith.constant 0 : index
    %20 = vector.load %arg6[%c20_25, %c0_26] : memref<100x400xf32, #tpu.memory_space<vmem>>, vector<4x400xf32>
    tpu.vector_store %arg6[%c20_25, %c0_26], %19 {strides = array<i32>} : memref<100x400xf32, #tpu.memory_space<vmem>>, vector<4x400xf32>,
    %c0_27 = arith.constant 0 : index
    %c0_28 = arith.constant 0 : index
    %c21 = arith.constant 21 : index
    %21 = vector.load %arg1[%c0_27, %c0_28, %c21] : memref<1x4x484xf32, #tpu.memory_space<vmem>>, vector<1x4x400xf32>
    %22 = vector.shape_cast %21 : vector<1x4x400xf32> to vector<4x400xf32>
    %c24 = arith.constant 24 : index
    %c0_29 = arith.constant 0 : index
    %23 = vector.load %arg6[%c24, %c0_29] : memref<100x400xf32, #tpu.memory_space<vmem>>, vector<4x400xf32>
    tpu.vector_store %arg6[%c24, %c0_29], %22 {strides = array<i32>} : memref<100x400xf32, #tpu.memory_space<vmem>>, vector<4x400xf32>,
    %c0_30 = arith.constant 0 : index
    %c0_31 = arith.constant 0 : index
    %c22 = arith.constant 22 : index
    %24 = vector.load %arg1[%c0_30, %c0_31, %c22] : memref<1x4x484xf32, #tpu.memory_space<vmem>>, vector<1x4x400xf32>
    %25 = vector.shape_cast %24 : vector<1x4x400xf32> to vector<4x400xf32>
    %c28 = arith.constant 28 : index
    %c0_32 = arith.constant 0 : index
    %26 = vector.load %arg6[%c28, %c0_32] : memref<100x400xf32, #tpu.memory_space<vmem>>, vector<4x400xf32>
    tpu.vector_store %arg6[%c28, %c0_32], %25 {strides = array<i32>} : memref<100x400xf32, #tpu.memory_space<vmem>>, vector<4x400xf32>,
    %c0_33 = arith.constant 0 : index
    %c0_34 = arith.constant 0 : index
    %c23 = arith.constant 23 : index
    %27 = vector.load %arg1[%c0_33, %c0_34, %c23] : memref<1x4x484xf32, #tpu.memory_space<vmem>>, vector<1x4x400xf32>
    %28 = vector.shape_cast %27 : vector<1x4x400xf32> to vector<4x400xf32>
    %c32 = arith.constant 32 : index
    %c0_35 = arith.constant 0 : index
    %29 = vector.load %arg6[%c32, %c0_35] : memref<100x400xf32, #tpu.memory_space<vmem>>, vector<4x400xf32>
    tpu.vector_store %arg6[%c32, %c0_35], %28 {strides = array<i32>} : memref<100x400xf32, #tpu.memory_space<vmem>>, vector<4x400xf32>,
    %c0_36 = arith.constant 0 : index
    %c0_37 = arith.constant 0 : index
    %c24_38 = arith.constant 24 : index
    %30 = vector.load %arg1[%c0_36, %c0_37, %c24_38] : memref<1x4x484xf32, #tpu.memory_space<vmem>>, vector<1x4x400xf32>
    %31 = vector.shape_cast %30 : vector<1x4x400xf32> to vector<4x400xf32>
    %c36 = arith.constant 36 : index
    %c0_39 = arith.constant 0 : index
    %32 = vector.load %arg6[%c36, %c0_39] : memref<100x400xf32, #tpu.memory_space<vmem>>, vector<4x400xf32>
    tpu.vector_store %arg6[%c36, %c0_39], %31 {strides = array<i32>} : memref<100x400xf32, #tpu.memory_space<vmem>>, vector<4x400xf32>,
    %c0_40 = arith.constant 0 : index
    %c0_41 = arith.constant 0 : index
    %c40 = arith.constant 40 : index
    %33 = vector.load %arg1[%c0_40, %c0_41, %c40] : memref<1x4x484xf32, #tpu.memory_space<vmem>>, vector<1x4x400xf32>
    %34 = vector.shape_cast %33 : vector<1x4x400xf32> to vector<4x400xf32>
    %c40_42 = arith.constant 40 : index
    %c0_43 = arith.constant 0 : index
    %35 = vector.load %arg6[%c40_42, %c0_43] : memref<100x400xf32, #tpu.memory_space<vmem>>, vector<4x400xf32>
    tpu.vector_store %arg6[%c40_42, %c0_43], %34 {strides = array<i32>} : memref<100x400xf32, #tpu.memory_space<vmem>>, vector<4x400xf32>,
    %c0_44 = arith.constant 0 : index
    %c0_45 = arith.constant 0 : index
    %c41 = arith.constant 41 : index
    %36 = vector.load %arg1[%c0_44, %c0_45, %c41] : memref<1x4x484xf32, #tpu.memory_space<vmem>>, vector<1x4x400xf32>
    %37 = vector.shape_cast %36 : vector<1x4x400xf32> to vector<4x400xf32>
    %c44 = arith.constant 44 : index
    %c0_46 = arith.constant 0 : index
    %38 = vector.load %arg6[%c44, %c0_46] : memref<100x400xf32, #tpu.memory_space<vmem>>, vector<4x400xf32>
    tpu.vector_store %arg6[%c44, %c0_46], %37 {strides = array<i32>} : memref<100x400xf32, #tpu.memory_space<vmem>>, vector<4x400xf32>,
    %c0_47 = arith.constant 0 : index
    %c0_48 = arith.constant 0 : index
    %c42 = arith.constant 42 : index
    %39 = vector.load %arg1[%c0_47, %c0_48, %c42] : memref<1x4x484xf32, #tpu.memory_space<vmem>>, vector<1x4x400xf32>
    %40 = vector.shape_cast %39 : vector<1x4x400xf32> to vector<4x400xf32>
    %c48 = arith.constant 48 : index
    %c0_49 = arith.constant 0 : index
    %41 = vector.load %arg6[%c48, %c0_49] : memref<100x400xf32, #tpu.memory_space<vmem>>, vector<4x400xf32>
    tpu.vector_store %arg6[%c48, %c0_49], %40 {strides = array<i32>} : memref<100x400xf32, #tpu.memory_space<vmem>>, vector<4x400xf32>,
    %c0_50 = arith.constant 0 : index
    %c0_51 = arith.constant 0 : index
    %c43 = arith.constant 43 : index
    %42 = vector.load %arg1[%c0_50, %c0_51, %c43] : memref<1x4x484xf32, #tpu.memory_space<vmem>>, vector<1x4x400xf32>
    %43 = vector.shape_cast %42 : vector<1x4x400xf32> to vector<4x400xf32>
    %c52 = arith.constant 52 : index
    %c0_52 = arith.constant 0 : index
    %44 = vector.load %arg6[%c52, %c0_52] : memref<100x400xf32, #tpu.memory_space<vmem>>, vector<4x400xf32>
    tpu.vector_store %arg6[%c52, %c0_52], %43 {strides = array<i32>} : memref<100x400xf32, #tpu.memory_space<vmem>>, vector<4x400xf32>,
    %c0_53 = arith.constant 0 : index
    %c0_54 = arith.constant 0 : index
    %c44_55 = arith.constant 44 : index
    %45 = vector.load %arg1[%c0_53, %c0_54, %c44_55] : memref<1x4x484xf32, #tpu.memory_space<vmem>>, vector<1x4x400xf32>
    %46 = vector.shape_cast %45 : vector<1x4x400xf32> to vector<4x400xf32>
    %c56 = arith.constant 56 : index
    %c0_56 = arith.constant 0 : index
    %47 = vector.load %arg6[%c56, %c0_56] : memref<100x400xf32, #tpu.memory_space<vmem>>, vector<4x400xf32>
    tpu.vector_store %arg6[%c56, %c0_56], %46 {strides = array<i32>} : memref<100x400xf32, #tpu.memory_space<vmem>>, vector<4x400xf32>,
    %c0_57 = arith.constant 0 : index
    %c0_58 = arith.constant 0 : index
    %c60 = arith.constant 60 : index
    %48 = vector.load %arg1[%c0_57, %c0_58, %c60] : memref<1x4x484xf32, #tpu.memory_space<vmem>>, vector<1x4x400xf32>
    %49 = vector.shape_cast %48 : vector<1x4x400xf32> to vector<4x400xf32>
    %c60_59 = arith.constant 60 : index
    %c0_60 = arith.constant 0 : index
    %50 = vector.load %arg6[%c60_59, %c0_60] : memref<100x400xf32, #tpu.memory_space<vmem>>, vector<4x400xf32>
    tpu.vector_store %arg6[%c60_59, %c0_60], %49 {strides = array<i32>} : memref<100x400xf32, #tpu.memory_space<vmem>>, vector<4x400xf32>,
    %c0_61 = arith.constant 0 : index
    %c0_62 = arith.constant 0 : index
    %c61 = arith.constant 61 : index
    %51 = vector.load %arg1[%c0_61, %c0_62, %c61] : memref<1x4x484xf32, #tpu.memory_space<vmem>>, vector<1x4x400xf32>
    %52 = vector.shape_cast %51 : vector<1x4x400xf32> to vector<4x400xf32>
    %c64 = arith.constant 64 : index
    %c0_63 = arith.constant 0 : index
    %53 = vector.load %arg6[%c64, %c0_63] : memref<100x400xf32, #tpu.memory_space<vmem>>, vector<4x400xf32>
    tpu.vector_store %arg6[%c64, %c0_63], %52 {strides = array<i32>} : memref<100x400xf32, #tpu.memory_space<vmem>>, vector<4x400xf32>,
    %c0_64 = arith.constant 0 : index
    %c0_65 = arith.constant 0 : index
    %c62 = arith.constant 62 : index
    %54 = vector.load %arg1[%c0_64, %c0_65, %c62] : memref<1x4x484xf32, #tpu.memory_space<vmem>>, vector<1x4x400xf32>
    %55 = vector.shape_cast %54 : vector<1x4x400xf32> to vector<4x400xf32>
    %c68 = arith.constant 68 : index
    %c0_66 = arith.constant 0 : index
    %56 = vector.load %arg6[%c68, %c0_66] : memref<100x400xf32, #tpu.memory_space<vmem>>, vector<4x400xf32>
    tpu.vector_store %arg6[%c68, %c0_66], %55 {strides = array<i32>} : memref<100x400xf32, #tpu.memory_space<vmem>>, vector<4x400xf32>,
    %c0_67 = arith.constant 0 : index
    %c0_68 = arith.constant 0 : index
    %c63 = arith.constant 63 : index
    %57 = vector.load %arg1[%c0_67, %c0_68, %c63] : memref<1x4x484xf32, #tpu.memory_space<vmem>>, vector<1x4x400xf32>
    %58 = vector.shape_cast %57 : vector<1x4x400xf32> to vector<4x400xf32>
    %c72 = arith.constant 72 : index
    %c0_69 = arith.constant 0 : index
    %59 = vector.load %arg6[%c72, %c0_69] : memref<100x400xf32, #tpu.memory_space<vmem>>, vector<4x400xf32>
    tpu.vector_store %arg6[%c72, %c0_69], %58 {strides = array<i32>} : memref<100x400xf32, #tpu.memory_space<vmem>>, vector<4x400xf32>,
    %c0_70 = arith.constant 0 : index
    %c0_71 = arith.constant 0 : index
    %c64_72 = arith.constant 64 : index
    %60 = vector.load %arg1[%c0_70, %c0_71, %c64_72] : memref<1x4x484xf32, #tpu.memory_space<vmem>>, vector<1x4x400xf32>
    %61 = vector.shape_cast %60 : vector<1x4x400xf32> to vector<4x400xf32>
    %c76 = arith.constant 76 : index
    %c0_73 = arith.constant 0 : index
    %62 = vector.load %arg6[%c76, %c0_73] : memref<100x400xf32, #tpu.memory_space<vmem>>, vector<4x400xf32>
    tpu.vector_store %arg6[%c76, %c0_73], %61 {strides = array<i32>} : memref<100x400xf32, #tpu.memory_space<vmem>>, vector<4x400xf32>,
    %c0_74 = arith.constant 0 : index
    %c0_75 = arith.constant 0 : index
    %c80 = arith.constant 80 : index
    %63 = vector.load %arg1[%c0_74, %c0_75, %c80] : memref<1x4x484xf32, #tpu.memory_space<vmem>>, vector<1x4x400xf32>
    %64 = vector.shape_cast %63 : vector<1x4x400xf32> to vector<4x400xf32>
    %c80_76 = arith.constant 80 : index
    %c0_77 = arith.constant 0 : index
    %65 = vector.load %arg6[%c80_76, %c0_77] : memref<100x400xf32, #tpu.memory_space<vmem>>, vector<4x400xf32>
    tpu.vector_store %arg6[%c80_76, %c0_77], %64 {strides = array<i32>} : memref<100x400xf32, #tpu.memory_space<vmem>>, vector<4x400xf32>,
    %c0_78 = arith.constant 0 : index
    %c0_79 = arith.constant 0 : index
    %c81 = arith.constant 81 : index
    %66 = vector.load %arg1[%c0_78, %c0_79, %c81] : memref<1x4x484xf32, #tpu.memory_space<vmem>>, vector<1x4x400xf32>
    %67 = vector.shape_cast %66 : vector<1x4x400xf32> to vector<4x400xf32>
    %c84 = arith.constant 84 : index
    %c0_80 = arith.constant 0 : index
    %68 = vector.load %arg6[%c84, %c0_80] : memref<100x400xf32, #tpu.memory_space<vmem>>, vector<4x400xf32>
    tpu.vector_store %arg6[%c84, %c0_80], %67 {strides = array<i32>} : memref<100x400xf32, #tpu.memory_space<vmem>>, vector<4x400xf32>,
    %c0_81 = arith.constant 0 : index
    %c0_82 = arith.constant 0 : index
    %c82 = arith.constant 82 : index
    %69 = vector.load %arg1[%c0_81, %c0_82, %c82] : memref<1x4x484xf32, #tpu.memory_space<vmem>>, vector<1x4x400xf32>
    %70 = vector.shape_cast %69 : vector<1x4x400xf32> to vector<4x400xf32>
    %c88 = arith.constant 88 : index
    %c0_83 = arith.constant 0 : index
    %71 = vector.load %arg6[%c88, %c0_83] : memref<100x400xf32, #tpu.memory_space<vmem>>, vector<4x400xf32>
    tpu.vector_store %arg6[%c88, %c0_83], %70 {strides = array<i32>} : memref<100x400xf32, #tpu.memory_space<vmem>>, vector<4x400xf32>,
    %c0_84 = arith.constant 0 : index
    %c0_85 = arith.constant 0 : index
    %c83 = arith.constant 83 : index
    %72 = vector.load %arg1[%c0_84, %c0_85, %c83] : memref<1x4x484xf32, #tpu.memory_space<vmem>>, vector<1x4x400xf32>
    %73 = vector.shape_cast %72 : vector<1x4x400xf32> to vector<4x400xf32>
    %c92 = arith.constant 92 : index
    %c0_86 = arith.constant 0 : index
    %74 = vector.load %arg6[%c92, %c0_86] : memref<100x400xf32, #tpu.memory_space<vmem>>, vector<4x400xf32>
    tpu.vector_store %arg6[%c92, %c0_86], %73 {strides = array<i32>} : memref<100x400xf32, #tpu.memory_space<vmem>>, vector<4x400xf32>,
    %c0_87 = arith.constant 0 : index
    %c0_88 = arith.constant 0 : index
    %c84_89 = arith.constant 84 : index
    %75 = vector.load %arg1[%c0_87, %c0_88, %c84_89] : memref<1x4x484xf32, #tpu.memory_space<vmem>>, vector<1x4x400xf32>
    %76 = vector.shape_cast %75 : vector<1x4x400xf32> to vector<4x400xf32>
    %c96 = arith.constant 96 : index
    %c0_90 = arith.constant 0 : index
    %77 = vector.load %arg6[%c96, %c0_90] : memref<100x400xf32, #tpu.memory_space<vmem>>, vector<4x400xf32>
    tpu.vector_store %arg6[%c96, %c0_90], %76 {strides = array<i32>} : memref<100x400xf32, #tpu.memory_space<vmem>>, vector<4x400xf32>,
    %c0_91 = arith.constant 0 : index
    %c0_92 = arith.constant 0 : index
    %78 = vector.load %arg6[%c0_91, %c0_92] : memref<100x400xf32, #tpu.memory_space<vmem>>, vector<100x400xf32>
    %cst = arith.constant dense<0.000000e+00> : vector<8x400xf32>
    %79 = tpu.matmul %0, %78, %cst {dimension_numbers = #tpu.dot_dimension_numbers<[1], [0], [0], [1], [0, 0, 1, 1], [], []>} : vector<8x100xf32>, vector<100x400xf32>, vector<8x400xf32> -> vector<8x400xf32>
    %80 = vector.broadcast %1 : vector<8x1xf32> to vector<8x400xf32>
    %81 = arith.mulf %79, %80 : vector<8x400xf32>
    %82 = vector.broadcast %2 : vector<8x1xf32> to vector<8x400xf32>
    %83 = arith.addf %81, %82 : vector<8x400xf32>
    %cst_93 = arith.constant 0.000000e+00 : f32
    %84 = vector.broadcast %cst_93 : f32 to vector<8x400xf32>
    %85 = arith.maximumf %83, %84 : vector<8x400xf32>
    %c0_94 = arith.constant 0 : index
    %c0_95 = arith.constant 0 : index
    %c0_96 = arith.constant 0 : index
    %86 = vector.load %arg5[%c0_94, %c0_95, %c0_96] : memref<1x8x400xf32, #tpu.memory_space<vmem>>, vector<1x8x400xf32>
    %87 = vector.shape_cast %86 : vector<1x8x400xf32> to vector<8x400xf32>
    %88 = vector.shape_cast %85 : vector<8x400xf32> to vector<1x8x400xf32>
    tpu.vector_store %arg5[%c0_94, %c0_95, %c0_96], %88 {strides = array<i32>} : memref<1x8x400xf32, #tpu.memory_space<vmem>>, vector<1x8x400xf32>,
    return
  }
  func.func @transform_0(%arg0: i32) -> (i32, i32, i32) {
    %c0_i32 = arith.constant 0 : i32
    %c0_i32_0 = arith.constant 0 : i32
    %c0_i32_1 = arith.constant 0 : i32
    return %arg0, %c0_i32, %c0_i32_0 : i32, i32, i32
  }
  func.func @transform_1(%arg0: i32) -> (i32, i32) {
    %c0_i32 = arith.constant 0 : i32
    %c0_i32_0 = arith.constant 0 : i32
    %c0_i32_1 = arith.constant 0 : i32
    return %c0_i32, %c0_i32_0 : i32, i32
  }
  func.func @transform_2(%arg0: i32) -> (i32, i32) {
    %c0_i32 = arith.constant 0 : i32
    %c0_i32_0 = arith.constant 0 : i32
    %c0_i32_1 = arith.constant 0 : i32
    return %c0_i32, %c0_i32_0 : i32, i32
  }
  func.func @transform_3(%arg0: i32) -> (i32, i32) {
    %c0_i32 = arith.constant 0 : i32
    %c0_i32_0 = arith.constant 0 : i32
    %c0_i32_1 = arith.constant 0 : i32
    return %c0_i32, %c0_i32_0 : i32, i32
  }
  func.func @transform_4(%arg0: i32) -> (i32, i32, i32) {
    %c0_i32 = arith.constant 0 : i32
    %c0_i32_0 = arith.constant 0 : i32
    %c0_i32_1 = arith.constant 0 : i32
    return %arg0, %c0_i32, %c0_i32_0 : i32, i32, i32
  }
}

</mosaic_0001>

<llo_original>
// kernel: tpu_custom_call.1
$region0: #{tpu_custom_call.1}
  #allocation0 [shape = 'u32[]', space=smem, size = 0x4, offset = 0x4, fixed_abs, tag = 'smem constant byte address 0x4 - core index']
  #allocation1 [shape = 'u32[144,128]{1,0:T(1,128)}', space=vmem, size = 0x12000, scoped, tag = 'internal scratch']
  #allocation2 [shape = 'f32[100,400]{1,0:T(8,128)}', space=vmem, size = 0x34000, scoped, tag = 'scratch operand']
  %s0 = inlined_call_operand.hbm [shape: f32[2,4,484], index: 0, kind: input, shape index: {}]
  %s1 = inlined_call_operand.vmem [shape: f32[8,100], index: 1, kind: input, shape index: {}]
  %s2 = inlined_call_operand.vmem [shape: f32[8,1], index: 2, kind: input, shape index: {}]
  %s3 = inlined_call_operand.vmem [shape: f32[8,1], index: 3, kind: input, shape index: {}]
  %s4 = inlined_call_operand.hbm [shape: f32[2,8,400], index: 4, kind: output, shape index: {}]
  %s5 = sld [smem:[#allocation0]]
  $region53: #{tpu_custom_call.1} parent=0
    _
  %s7 = ssub.s32 1, %s5
  %s8 = scalar_select 0, %s7, %s5
  $region1: #{tpu_custom_call.1} parent=0
    #allocation3 [shape = 'u8[16384]{0}', space=vmem, size = 0x4000, scoped, tag = 'input window, operand 0']
    #allocation4 [shape = 's32[2]{0}', space=sflag, size = 0x8, scoped, tag = 'scoped memory for tpu_custom_call.1']
    #allocation5 [shape = 's32[2]{0}', space=sflag, size = 0x8, scoped, tag = 'scoped memory for tpu_custom_call.1']
    #allocation6 [shape = 'u8[32768]{0}', space=vmem, size = 0x8000, scoped, tag = 'output window, operand 0']
    %9 = vsyncpa [#allocation4], 0
    %s10 = scalar_lea.sflag [#allocation4], 1
    %11 = vsyncpa %s10, 0
    %12 = vsyncpa [#allocation5], 0
    %s13 = scalar_lea.sflag [#allocation5], 1
    %14 = vsyncpa %s13, 0
    loop: start=0, step=1, limit=4
    $region2: #{tpu_custom_call.1} parent=1 // loop_pre_header
      _
    $region3: #{tpu_custom_call.1} parent=1 // loop_header
      %s16 = sphi 0, %s20
      %p17 = scmp.ge.s32.totalorder %s16, 4
      %s26 = sphi 0, %s28
      %s29 = sphi 0, %s26
      %s30 = sphi 0, %s29
      %s46 = sphi 0, %s30
      %s50 = sphi 0, %s50
      %s52 = sphi 0, %s50
      %s53 = sphi 0, %s52
      %s67 = sphi 0, %s53
      %s71 = sphi 0, %s71
      %s73 = sphi 0, %s71
      %s74 = sphi 0, %s73
      %s88 = sphi 0, %s74
      %s92 = sphi 0, %s92
      %s94 = sphi 0, %s92
      %s95 = sphi 0, %s94
      %s109 = sphi 0, %s95
      %s115 = sphi 0, %s117
      %s118 = sphi 0, %s115
      %s119 = sphi 0, %s118
      %s135 = sphi 0, %s119
    $region4: #{tpu_custom_call.1} parent=1 // loop_header_branch
      %19 = sbr.rel (%p17) target = $region8
    $region5: #{tpu_custom_call.1} parent=1 // loop_body
      %s21 = ssub.s32 %s16, 1
      %s22 = ssub.s32 %s16, 2
      %s23 = sadd.s32 %s16, 1
      %s24 = ssub.s32 %s16, %s23
      %p25 = scmp.eq.s32.totalorder %s24, 0
      %s27 = sadd.s32 %s26, 1
      %s28 = scalar_select %p25, %s26, %s27
      %p31 = pneg %p25
      %p32 = scmp.eq.s32.totalorder %s16, 1
      %p33 = por %p31, %p32
      %p34 = scmp.ne.s32.totalorder %s26, %s29
      %p35 = scmp.eq.s32.totalorder %s16, 0
      %p36 = por %p34, %p35
      %p37 = scmp.ne.s32.totalorder %s26, %s29
      %p38 = scmp.eq.s32.totalorder %s21, 1
      %p39 = por %p37, %p38
      %p40 = scmp.ne.s32.totalorder %s29, %s30
      %p41 = scmp.eq.s32.totalorder %s21, 0
      %p42 = por %p40, %p41
      %p43 = scmp.ne.s32.totalorder %s29, %s30
      %p44 = scmp.eq.s32.totalorder %s22, 1
      %p45 = por %p43, %p44
      %p47 = scmp.ne.s32.totalorder %s30, %s46
      %p48 = scmp.eq.s32.totalorder %s22, 0
      %p49 = por %p47, %p48
      %s51 = sadd.s32 %s50, 1
      %p54 = scmp.eq.s32.totalorder %s16, 1
      %p55 = scmp.ne.s32.totalorder %s50, %s52
      %p56 = scmp.eq.s32.totalorder %s16, 0
      %p57 = por %p55, %p56
      %p58 = scmp.ne.s32.totalorder %s50, %s52
      %p59 = scmp.eq.s32.totalorder %s21, 1
      %p60 = por %p58, %p59
      %p61 = scmp.ne.s32.totalorder %s52, %s53
      %p62 = scmp.eq.s32.totalorder %s21, 0
      %p63 = por %p61, %p62
      %p64 = scmp.ne.s32.totalorder %s52, %s53
      %p65 = scmp.eq.s32.totalorder %s22, 1
      %p66 = por %p64, %p65
      %p68 = scmp.ne.s32.totalorder %s53, %s67
      %p69 = scmp.eq.s32.totalorder %s22, 0
      %p70 = por %p68, %p69
      %s72 = sadd.s32 %s71, 1
      %p75 = scmp.eq.s32.totalorder %s16, 1
      %p76 = scmp.ne.s32.totalorder %s71, %s73
      %p77 = scmp.eq.s32.totalorder %s16, 0
      %p78 = por %p76, %p77
      %p79 = scmp.ne.s32.totalorder %s71, %s73
      %p80 = scmp.eq.s32.totalorder %s21, 1
      %p81 = por %p79, %p80
      %p82 = scmp.ne.s32.totalorder %s73, %s74
      %p83 = scmp.eq.s32.totalorder %s21, 0
      %p84 = por %p82, %p83
      %p85 = scmp.ne.s32.totalorder %s73, %s74
      %p86 = scmp.eq.s32.totalorder %s22, 1
      %p87 = por %p85, %p86
      %p89 = scmp.ne.s32.totalorder %s74, %s88
      %p90 = scmp.eq.s32.totalorder %s22, 0
      %p91 = por %p89, %p90
      %s93 = sadd.s32 %s92, 1
      %p96 = scmp.eq.s32.totalorder %s16, 1
      %p97 = scmp.ne.s32.totalorder %s92, %s94
      %p98 = scmp.eq.s32.totalorder %s16, 0
      %p99 = por %p97, %p98
      %p100 = scmp.ne.s32.totalorder %s92, %s94
      %p101 = scmp.eq.s32.totalorder %s21, 1
      %p102 = por %p100, %p101
      %p103 = scmp.ne.s32.totalorder %s94, %s95
      %p104 = scmp.eq.s32.totalorder %s21, 0
      %p105 = por %p103, %p104
      %p106 = scmp.ne.s32.totalorder %s94, %s95
      %p107 = scmp.eq.s32.totalorder %s22, 1
      %p108 = por %p106, %p107
      %p110 = scmp.ne.s32.totalorder %s95, %s109
      %p111 = scmp.eq.s32.totalorder %s22, 0
      %p112 = por %p110, %p111
      %s113 = ssub.s32 %s16, %s23
      %p114 = scmp.eq.s32.totalorder %s113, 0
      %s116 = sadd.s32 %s115, 1
      %s117 = scalar_select %p114, %s115, %s116
      %p120 = pneg %p114
      %p121 = scmp.eq.s32.totalorder %s16, 1
      %p122 = por %p120, %p121
      %p123 = scmp.ne.s32.totalorder %s115, %s118
      %p124 = scmp.eq.s32.totalorder %s16, 0
      %p125 = por %p123, %p124
      %p126 = scmp.ne.s32.totalorder %s115, %s118
      %p127 = scmp.eq.s32.totalorder %s21, 1
      %p128 = por %p126, %p127
      %p129 = scmp.ne.s32.totalorder %s118, %s119
      %p130 = scmp.eq.s32.totalorder %s21, 0
      %p131 = por %p129, %p130
      %p132 = scmp.ne.s32.totalorder %s118, %s119
      %p133 = scmp.eq.s32.totalorder %s22, 1
      %p134 = por %p132, %p133
      %p136 = scmp.ne.s32.totalorder %s119, %s135
      %p137 = scmp.eq.s32.totalorder %s22, 0
      %p138 = por %p136, %p137
      %p139 = scmp.le.s32.totalorder 1, %s16
      %p140 = scmp.lt.s32.totalorder %s16, 3
      %p141 = pnand %p139, %p140
      %p142 = pneg %p141
      // Predicated region
      $region9: #{tpu_custom_call.1} parent=5 // pred_check
        _
      $region10: #{tpu_custom_call.1} parent=5 // pred_check_branch
        %144 = sbr.rel (%p141) target = $region12
      $region11: #{tpu_custom_call.1} parent=5 // pred_region
        %s145 = ssub.s32 %s16, 1
        // Predicated region
        $region13: #{tpu_custom_call.1} parent=11 // pred_check
          %p146 = pneg %p63
        $region14: #{tpu_custom_call.1} parent=11 // pred_check_branch
          %148 = sbr.rel (%p146) target = $region16
        $region15: #{tpu_custom_call.1} parent=11 // pred_region
          _
        $region16: #{tpu_custom_call.1} parent=11 // pred_fallthru
          _
        // Predicated region
        $region17: #{tpu_custom_call.1} parent=11 // pred_check
          %p149 = pneg %p84
        $region18: #{tpu_custom_call.1} parent=11 // pred_check_branch
          %151 = sbr.rel (%p149) target = $region20
        $region19: #{tpu_custom_call.1} parent=11 // pred_region
          _
        $region20: #{tpu_custom_call.1} parent=11 // pred_fallthru
          _
        // Predicated region
        $region21: #{tpu_custom_call.1} parent=11 // pred_check
          %p152 = pneg %p105
        $region22: #{tpu_custom_call.1} parent=11 // pred_check_branch
          %154 = sbr.rel (%p152) target = $region24
        $region23: #{tpu_custom_call.1} parent=11 // pred_region
          _
        $region24: #{tpu_custom_call.1} parent=11 // pred_fallthru
          _
      $region12: #{tpu_custom_call.1} parent=5 // pred_fallthru
        _
      %p155 = scmp.lt.s32.totalorder %s16, 2
      // Predicated region
      $region25: #{tpu_custom_call.1} parent=5 // pred_check
        %p156 = pneg %p155
      $region26: #{tpu_custom_call.1} parent=5 // pred_check_branch
        %158 = sbr.rel (%p156) target = $region28
      $region27: #{tpu_custom_call.1} parent=5 // pred_region
        // Predicated region
        $region29: #{tpu_custom_call.1} parent=27 // pred_check
          %p159 = pneg %p36
        $region30: #{tpu_custom_call.1} parent=27 // pred_check_branch
          %161 = sbr.rel (%p159) target = $region32
        $region31: #{tpu_custom_call.1} parent=27 // pred_region
          %s162 = sand.u32 %s26, 1
          %s163 = scalar_lea.sflag [#allocation4], %s162
          %s164 = sand.u32 %s26, 1
          %s165 = smul.addr %s164, 16
          %s166 = scalar_lea.vmem [#allocation3], %s165
          %s168 = ssub.s32 256, 256
          %169 = vsyncadd %s163, %s168
          %s170 = smul.addr %s16, 4
          %s171 = smul.addr %s170, 64
          %s172 = scalar_lea.hbm %s0, %s171
          %s174 = sshll.u32 %s166, 4
          %s175 = int_to_ptr.vmem [resolvable:$true] %s174
          %177 = dma.hbm_to_vmem [thread:$0]  %s172, 256, %s175, %s163
        $region32: #{tpu_custom_call.1} parent=27 // pred_fallthru
          _
      $region28: #{tpu_custom_call.1} parent=5 // pred_fallthru
        _
      %p178 = scmp.le.s32.totalorder 1, %s16
      %p179 = scmp.lt.s32.totalorder %s16, 3
      %p180 = pnand %p178, %p179
      %p181 = pneg %p180
      // Predicated region
      $region33: #{tpu_custom_call.1} parent=5 // pred_check
        _
      $region34: #{tpu_custom_call.1} parent=5 // pred_check_branch
        %183 = sbr.rel (%p180) target = $region36
      $region35: #{tpu_custom_call.1} parent=5 // pred_region
        %s184 = ssub.s32 %s16, 1
        %s185 = sand.u32 %s29, 1
        %s186 = scalar_lea.sflag [#allocation4], %s185
        %s187 = sand.u32 %s29, 1
        %s188 = smul.addr %s187, 16
        %s189 = scalar_lea.vmem [#allocation3], %s188
        // Predicated region
        $region37: #{tpu_custom_call.1} parent=35 // pred_check
          %p190 = pneg %p42
        $region38: #{tpu_custom_call.1} parent=35 // pred_check_branch
          %192 = sbr.rel (%p190) target = $region40
        $region39: #{tpu_custom_call.1} parent=35 // pred_region
          %193 = dma.done %s186, 256
        $region40: #{tpu_custom_call.1} parent=35 // pred_fallthru
          _
        %s194 = sand.u32 %s29, 1
        %s195 = scalar_lea.sflag [#allocation4], %s194
        %s196 = sand.u32 %s29, 1
        %s197 = smul.addr %s196, 16
        %s198 = scalar_lea.vmem [#allocation3], %s197
        %p199 = pneg %p42
        %p200 = pneg %p39
        %p201 = pneg %p63
        %p202 = pneg %p60
        %p203 = pneg %p84
        %p204 = pneg %p81
        %p205 = pneg %p105
        %p206 = pneg %p102
        %p207 = pneg %p131
        %p208 = pneg %p128
        %s209 = sand.u32 %s118, 1
        %s210 = scalar_lea.sflag [#allocation5], %s209
        %s211 = sand.u32 %s118, 1
        %s212 = smul.addr %s211, 32
        %s213 = scalar_lea.vmem [#allocation6], %s212
        %v214 = vld [vmem:[%s1] sm:$0xff]
        %v215 = vld [vmem:[%s2] sm:$0xff]
        %v216 = vld [vmem:[%s3] sm:$0xff]
        %v217 = vld [vmem:[%s189] sm:$0xff]
        %v218 = vld [vmem:[%s189 + $0x8] sm:$0xff]
        %v221 = vcombine.high %v217, %v217
        %v222 = vcombine.high %v218, %v218
        %225 = vst [vmem:[#allocation2] sm:$0xf] %v217
        %226 = vst [vmem:[#allocation2 + $0x8] sm:$0xf] %v221
        %227 = vst [vmem:[#allocation2 + $0x10] sm:$0xf] %v218
        %vm228 = vcmask 125952
        %229 = vst.msk [vmem:[#allocation2 + $0x18] sm:$0xf] %vm228, %v222
        %v230 = vld [vmem:[%s189] sm:$0xff]
        %v231 = vld [vmem:[%s189 + $0x8] sm:$0xff]
        %v234 = vcombine.low %v230, %v230
        %v235 = vcombine.low %v231, %v231
        %236 = vrot.lane.b32.xlu0 %v234, 127
        %v237 = vpop.permute.xlu0 %236
        %238 = vrot.lane.b32.xlu0 %v230, 127
        %v239 = vpop.permute.xlu0 %238
        %240 = vrot.lane.b32.xlu0 %v235, 127
        %v241 = vpop.permute.xlu0 %240
        %242 = vrot.lane.b32.xlu0 %v231, 127
        %v243 = vpop.permute.xlu0 %242
        %vm244 = vcmask 1039360
        %v245 = vsel %vm244, %v237, %v239
        %v246 = vsel %vm244, %v239, %v241
        %v247 = vsel %vm244, %v241, %v243
        %252 = vst [vmem:[#allocation2] sm:$0xf0] %v245
        %253 = vst [vmem:[#allocation2 + $0x8] sm:$0xf0] %v246
        %254 = vst [vmem:[#allocation2 + $0x10] sm:$0xf0] %v247
        %vm255 = vcmask 130052
        %256 = vst.msk [vmem:[#allocation2 + $0x18] sm:$0xf0] %vm255, %v243
        %v257 = vld [vmem:[%s189] sm:$0xff]
        %v258 = vld [vmem:[%s189 + $0x8] sm:$0xff]
        %v261 = vcombine.high %v257, %v257
        %v262 = vcombine.high %v258, %v258
        %263 = vrot.lane.b32.xlu0 %v257, 126
        %v264 = vpop.permute.xlu0 %263
        %265 = vrot.lane.b32.xlu0 %v261, 126
        %v266 = vpop.permute.xlu0 %265
        %267 = vrot.lane.b32.xlu0 %v258, 126
        %v268 = vpop.permute.xlu0 %267
        %269 = vrot.lane.b32.xlu0 %v262, 126
        %v270 = vpop.permute.xlu0 %269
        %vm271 = vcmask 1031168
        %v272 = vsel %vm271, %v264, %v266
        %v273 = vsel %vm271, %v266, %v268
        %v274 = vsel %vm271, %v268, %v270
        %279 = vst [vmem:[#allocation2 + $0x20] sm:$0xf] %v272
        %280 = vst [vmem:[#allocation2 + $0x28] sm:$0xf] %v273
        %281 = vst [vmem:[#allocation2 + $0x30] sm:$0xf] %v274
        %282 = vst.msk [vmem:[#allocation2 + $0x38] sm:$0xf] %vm228, %v270
        %v283 = vld [vmem:[%s189] sm:$0xff]
        %v284 = vld [vmem:[%s189 + $0x8] sm:$0xff]
        %v287 = vcombine.low %v283, %v283
        %v288 = vcombine.low %v284, %v284
        %289 = vrot.lane.b32.xlu0 %v287, 125
        %v290 = vpop.permute.xlu0 %289
        %291 = vrot.lane.b32.xlu0 %v283, 125
        %v292 = vpop.permute.xlu0 %291
        %293 = vrot.lane.b32.xlu0 %v288, 125
        %v294 = vpop.permute.xlu0 %293
        %295 = vrot.lane.b32.xlu0 %v284, 125
        %v296 = vpop.permute.xlu0 %295
        %vm297 = vcmask 1022976
        %v298 = vsel %vm297, %v290, %v292
        %v299 = vsel %vm297, %v292, %v294
        %v300 = vsel %vm297, %v294, %v296
        %305 = vst [vmem:[#allocation2 + $0x20] sm:$0xf0] %v298
        %306 = vst [vmem:[#allocation2 + $0x28] sm:$0xf0] %v299
        %307 = vst [vmem:[#allocation2 + $0x30] sm:$0xf0] %v300
        %308 = vst.msk [vmem:[#allocation2 + $0x38] sm:$0xf0] %vm255, %v296
        %v309 = vld [vmem:[%s189] sm:$0xff]
        %v310 = vld [vmem:[%s189 + $0x8] sm:$0xff]
        %v313 = vcombine.high %v309, %v309
        %v314 = vcombine.high %v310, %v310
        %315 = vrot.lane.b32.xlu0 %v309, 124
        %v316 = vpop.permute.xlu0 %315
        %317 = vrot.lane.b32.xlu0 %v313, 124
        %v318 = vpop.permute.xlu0 %317
        %319 = vrot.lane.b32.xlu0 %v310, 124
        %v320 = vpop.permute.xlu0 %319
        %321 = vrot.lane.b32.xlu0 %v314, 124
        %v322 = vpop.permute.xlu0 %321
        %vm323 = vcmask 1014784
        %v324 = vsel %vm323, %v316, %v318
        %v325 = vsel %vm323, %v318, %v320
        %v326 = vsel %vm323, %v320, %v322
        %331 = vst [vmem:[#allocation2 + $0x40] sm:$0xf] %v324
        %332 = vst [vmem:[#allocation2 + $0x48] sm:$0xf] %v325
        %333 = vst [vmem:[#allocation2 + $0x50] sm:$0xf] %v326
        %334 = vst.msk [vmem:[#allocation2 + $0x58] sm:$0xf] %vm228, %v322
        %v335 = vld [vmem:[%s189] sm:$0xff]
        %v336 = vld [vmem:[%s189 + $0x8] sm:$0xff]
        %v339 = vcombine.low %v335, %v335
        %v340 = vcombine.low %v336, %v336
        %341 = vrot.lane.b32.xlu0 %v339, 108
        %v342 = vpop.permute.xlu0 %341
        %343 = vrot.lane.b32.xlu0 %v335, 108
        %v344 = vpop.permute.xlu0 %343
        %345 = vrot.lane.b32.xlu0 %v340, 108
        %v346 = vpop.permute.xlu0 %345
        %347 = vrot.lane.b32.xlu0 %v336, 108
        %v348 = vpop.permute.xlu0 %347
        %vm349 = vcmask 883712
        %v350 = vsel %vm349, %v342, %v344
        %v351 = vsel %vm349, %v344, %v346
        %v352 = vsel %vm349, %v346, %v348
        %357 = vst [vmem:[#allocation2 + $0x40] sm:$0xf0] %v350
        %358 = vst [vmem:[#allocation2 + $0x48] sm:$0xf0] %v351
        %359 = vst [vmem:[#allocation2 + $0x50] sm:$0xf0] %v352
        %360 = vst.msk [vmem:[#allocation2 + $0x58] sm:$0xf0] %vm255, %v348
        %v361 = vld [vmem:[%s189] sm:$0xff]
        %v362 = vld [vmem:[%s189 + $0x8] sm:$0xff]
        %v365 = vcombine.high %v361, %v361
        %v366 = vcombine.high %v362, %v362
        %367 = vrot.lane.b32.xlu0 %v361, 107
        %v368 = vpop.permute.xlu0 %367
        %369 = vrot.lane.b32.xlu0 %v365, 107
        %v370 = vpop.permute.xlu0 %369
        %371 = vrot.lane.b32.xlu0 %v362, 107
        %v372 = vpop.permute.xlu0 %371
        %373 = vrot.lane.b32.xlu0 %v366, 107
        %v374 = vpop.permute.xlu0 %373
        %vm375 = vcmask 875520
        %v376 = vsel %vm375, %v368, %v370
        %v377 = vsel %vm375, %v370, %v372
        %v378 = vsel %vm375, %v372, %v374
        %383 = vst [vmem:[#allocation2 + $0x60] sm:$0xf] %v376
        %384 = vst [vmem:[#allocation2 + $0x68] sm:$0xf] %v377
        %385 = vst [vmem:[#allocation2 + $0x70] sm:$0xf] %v378
        %386 = vst.msk [vmem:[#allocation2 + $0x78] sm:$0xf] %vm228, %v374
        %v387 = vld [vmem:[%s189] sm:$0xff]
        %v388 = vld [vmem:[%s189 + $0x8] sm:$0xff]
        %v391 = vcombine.low %v387, %v387
        %v392 = vcombine.low %v388, %v388
        %393 = vrot.lane.b32.xlu0 %v391, 106
        %v394 = vpop.permute.xlu0 %393
        %395 = vrot.lane.b32.xlu0 %v387, 106
        %v396 = vpop.permute.xlu0 %395
        %397 = vrot.lane.b32.xlu0 %v392, 106
        %v398 = vpop.permute.xlu0 %397
        %399 = vrot.lane.b32.xlu0 %v388, 106
        %v400 = vpop.permute.xlu0 %399
        %vm401 = vcmask 867328
        %v402 = vsel %vm401, %v394, %v396
        %v403 = vsel %vm401, %v396, %v398
        %v404 = vsel %vm401, %v398, %v400
        %409 = vst [vmem:[#allocation2 + $0x60] sm:$0xf0] %v402
        %410 = vst [vmem:[#allocation2 + $0x68] sm:$0xf0] %v403
        %411 = vst [vmem:[#allocation2 + $0x70] sm:$0xf0] %v404
        %412 = vst.msk [vmem:[#allocation2 + $0x78] sm:$0xf0] %vm255, %v400
        %v413 = vld [vmem:[%s189] sm:$0xff]
        %v414 = vld [vmem:[%s189 + $0x8] sm:$0xff]
        %v417 = vcombine.high %v413, %v413
        %v418 = vcombine.high %v414, %v414
        %419 = vrot.lane.b32.xlu0 %v413, 105
        %v420 = vpop.permute.xlu0 %419
        %421 = vrot.lane.b32.xlu0 %v417, 105
        %v422 = vpop.permute.xlu0 %421
        %423 = vrot.lane.b32.xlu0 %v414, 105
        %v424 = vpop.permute.xlu0 %423
        %425 = vrot.lane.b32.xlu0 %v418, 105
        %v426 = vpop.permute.xlu0 %425
        %vm427 = vcmask 859136
        %v428 = vsel %vm427, %v420, %v422
        %v429 = vsel %vm427, %v422, %v424
        %v430 = vsel %vm427, %v424, %v426
        %435 = vst [vmem:[#allocation2 + $0x80] sm:$0xf] %v428
        %436 = vst [vmem:[#allocation2 + $0x88] sm:$0xf] %v429
        %437 = vst [vmem:[#allocation2 + $0x90] sm:$0xf] %v430
        %438 = vst.msk [vmem:[#allocation2 + $0x98] sm:$0xf] %vm228, %v426
        %v439 = vld [vmem:[%s189] sm:$0xff]
        %v440 = vld [vmem:[%s189 + $0x8] sm:$0xff]
        %v443 = vcombine.low %v439, %v439
        %v444 = vcombine.low %v440, %v440
        %445 = vrot.lane.b32.xlu0 %v443, 104
        %v446 = vpop.permute.xlu0 %445
        %447 = vrot.lane.b32.xlu0 %v439, 104
        %v448 = vpop.permute.xlu0 %447
        %449 = vrot.lane.b32.xlu0 %v444, 104
        %v450 = vpop.permute.xlu0 %449
        %451 = vrot.lane.b32.xlu0 %v440, 104
        %v452 = vpop.permute.xlu0 %451
        %vm453 = vcmask 850944
        %v454 = vsel %vm453, %v446, %v448
        %v455 = vsel %vm453, %v448, %v450
        %v456 = vsel %vm453, %v450, %v452
        %461 = vst [vmem:[#allocation2 + $0x80] sm:$0xf0] %v454
        %462 = vst [vmem:[#allocation2 + $0x88] sm:$0xf0] %v455
        %463 = vst [vmem:[#allocation2 + $0x90] sm:$0xf0] %v456
        %464 = vst.msk [vmem:[#allocation2 + $0x98] sm:$0xf0] %vm255, %v452
        %v465 = vld [vmem:[%s189] sm:$0xff]
        %v466 = vld [vmem:[%s189 + $0x8] sm:$0xff]
        %v469 = vcombine.high %v465, %v465
        %v470 = vcombine.high %v466, %v466
        %471 = vrot.lane.b32.xlu0 %v465, 88
        %v472 = vpop.permute.xlu0 %471
        %473 = vrot.lane.b32.xlu0 %v469, 88
        %v474 = vpop.permute.xlu0 %473
        %475 = vrot.lane.b32.xlu0 %v466, 88
        %v476 = vpop.permute.xlu0 %475
        %477 = vrot.lane.b32.xlu0 %v470, 88
        %v478 = vpop.permute.xlu0 %477
        %vm479 = vcmask 719872
        %v480 = vsel %vm479, %v472, %v474
        %v481 = vsel %vm479, %v474, %v476
        %v482 = vsel %vm479, %v476, %v478
        %487 = vst [vmem:[#allocation2 + $0xa0] sm:$0xf] %v480
        %488 = vst [vmem:[#allocation2 + $0xa8] sm:$0xf] %v481
        %489 = vst [vmem:[#allocation2 + $0xb0] sm:$0xf] %v482
        %490 = vst.msk [vmem:[#allocation2 + $0xb8] sm:$0xf] %vm228, %v478
        %v491 = vld [vmem:[%s189] sm:$0xff]
        %v492 = vld [vmem:[%s189 + $0x8] sm:$0xff]
        %v495 = vcombine.low %v491, %v491
        %v496 = vcombine.low %v492, %v492
        %497 = vrot.lane.b32.xlu0 %v495, 87
        %v498 = vpop.permute.xlu0 %497
        %499 = vrot.lane.b32.xlu0 %v491, 87
        %v500 = vpop.permute.xlu0 %499
        %501 = vrot.lane.b32.xlu0 %v496, 87
        %v502 = vpop.permute.xlu0 %501
        %503 = vrot.lane.b32.xlu0 %v492, 87
        %v504 = vpop.permute.xlu0 %503
        %vm505 = vcmask 711680
        %v506 = vsel %vm505, %v498, %v500
        %v507 = vsel %vm505, %v500, %v502
        %v508 = vsel %vm505, %v502, %v504
        %513 = vst [vmem:[#allocation2 + $0xa0] sm:$0xf0] %v506
        %514 = vst [vmem:[#allocation2 + $0xa8] sm:$0xf0] %v507
        %515 = vst [vmem:[#allocation2 + $0xb0] sm:$0xf0] %v508
        %516 = vst.msk [vmem:[#allocation2 + $0xb8] sm:$0xf0] %vm255, %v504
        %v517 = vld [vmem:[%s189] sm:$0xff]
        %v518 = vld [vmem:[%s189 + $0x8] sm:$0xff]
        %v521 = vcombine.high %v517, %v517
        %v522 = vcombine.high %v518, %v518
        %523 = vrot.lane.b32.xlu0 %v517, 86
        %v524 = vpop.permute.xlu0 %523
        %525 = vrot.lane.b32.xlu0 %v521, 86
        %v526 = vpop.permute.xlu0 %525
        %527 = vrot.lane.b32.xlu0 %v518, 86
        %v528 = vpop.permute.xlu0 %527
        %529 = vrot.lane.b32.xlu0 %v522, 86
        %v530 = vpop.permute.xlu0 %529
        %vm531 = vcmask 703488
        %v532 = vsel %vm531, %v524, %v526
        %v533 = vsel %vm531, %v526, %v528
        %v534 = vsel %vm531, %v528, %v530
        %539 = vst [vmem:[#allocation2 + $0xc0] sm:$0xf] %v532
        %540 = vst [vmem:[#allocation2 + $0xc8] sm:$0xf] %v533
        %541 = vst [vmem:[#allocation2 + $0xd0] sm:$0xf] %v534
        %542 = vst.msk [vmem:[#allocation2 + $0xd8] sm:$0xf] %vm228, %v530
        %v543 = vld [vmem:[%s189] sm:$0xff]
        %v544 = vld [vmem:[%s189 + $0x8] sm:$0xff]
        %v547 = vcombine.low %v543, %v543
        %v548 = vcombine.low %v544, %v544
        %549 = vrot.lane.b32.xlu0 %v547, 85
        %v550 = vpop.permute.xlu0 %549
        %551 = vrot.lane.b32.xlu0 %v543, 85
        %v552 = vpop.permute.xlu0 %551
        %553 = vrot.lane.b32.xlu0 %v548, 85
        %v554 = vpop.permute.xlu0 %553
        %555 = vrot.lane.b32.xlu0 %v544, 85
        %v556 = vpop.permute.xlu0 %555
        %vm557 = vcmask 695296
        %v558 = vsel %vm557, %v550, %v552
        %v559 = vsel %vm557, %v552, %v554
        %v560 = vsel %vm557, %v554, %v556
        %565 = vst [vmem:[#allocation2 + $0xc0] sm:$0xf0] %v558
        %566 = vst [vmem:[#allocation2 + $0xc8] sm:$0xf0] %v559
        %567 = vst [vmem:[#allocation2 + $0xd0] sm:$0xf0] %v560
        %568 = vst.msk [vmem:[#allocation2 + $0xd8] sm:$0xf0] %vm255, %v556
        %v569 = vld [vmem:[%s189] sm:$0xff]
        %v570 = vld [vmem:[%s189 + $0x8] sm:$0xff]
        %v573 = vcombine.high %v569, %v569
        %v574 = vcombine.high %v570, %v570
        %575 = vrot.lane.b32.xlu0 %v569, 84
        %v576 = vpop.permute.xlu0 %575
        %577 = vrot.lane.b32.xlu0 %v573, 84
        %v578 = vpop.permute.xlu0 %577
        %579 = vrot.lane.b32.xlu0 %v570, 84
        %v580 = vpop.permute.xlu0 %579
        %581 = vrot.lane.b32.xlu0 %v574, 84
        %v582 = vpop.permute.xlu0 %581
        %vm583 = vcmask 687104
        %v584 = vsel %vm583, %v576, %v578
        %v585 = vsel %vm583, %v578, %v580
        %v586 = vsel %vm583, %v580, %v582
        %591 = vst [vmem:[#allocation2 + $0xe0] sm:$0xf] %v584
        %592 = vst [vmem:[#allocation2 + $0xe8] sm:$0xf] %v585
        %593 = vst [vmem:[#allocation2 + $0xf0] sm:$0xf] %v586
        %594 = vst.msk [vmem:[#allocation2 + $0xf8] sm:$0xf] %vm228, %v582
        %v595 = vld [vmem:[%s189] sm:$0xff]
        %v596 = vld [vmem:[%s189 + $0x8] sm:$0xff]
        %v599 = vcombine.low %v595, %v595
        %v600 = vcombine.low %v596, %v596
        %601 = vrot.lane.b32.xlu0 %v599, 68
        %v602 = vpop.permute.xlu0 %601
        %603 = vrot.lane.b32.xlu0 %v595, 68
        %v604 = vpop.permute.xlu0 %603
        %605 = vrot.lane.b32.xlu0 %v600, 68
        %v606 = vpop.permute.xlu0 %605
        %607 = vrot.lane.b32.xlu0 %v596, 68
        %v608 = vpop.permute.xlu0 %607
        %vm609 = vcmask 556032
        %v610 = vsel %vm609, %v602, %v604
        %v611 = vsel %vm609, %v604, %v606
        %v612 = vsel %vm609, %v606, %v608
        %617 = vst [vmem:[#allocation2 + $0xe0] sm:$0xf0] %v610
        %618 = vst [vmem:[#allocation2 + $0xe8] sm:$0xf0] %v611
        %619 = vst [vmem:[#allocation2 + $0xf0] sm:$0xf0] %v612
        %620 = vst.msk [vmem:[#allocation2 + $0xf8] sm:$0xf0] %vm255, %v608
        %v621 = vld [vmem:[%s189] sm:$0xff]
        %v622 = vld [vmem:[%s189 + $0x8] sm:$0xff]
        %v625 = vcombine.high %v621, %v621
        %v626 = vcombine.high %v622, %v622
        %627 = vrot.lane.b32.xlu0 %v621, 67
        %v628 = vpop.permute.xlu0 %627
        %629 = vrot.lane.b32.xlu0 %v625, 67
        %v630 = vpop.permute.xlu0 %629
        %631 = vrot.lane.b32.xlu0 %v622, 67
        %v632 = vpop.permute.xlu0 %631
        %633 = vrot.lane.b32.xlu0 %v626, 67
        %v634 = vpop.permute.xlu0 %633
        %vm635 = vcmask 547840
        %v636 = vsel %vm635, %v628, %v630
        %v637 = vsel %vm635, %v630, %v632
        %v638 = vsel %vm635, %v632, %v634
        %643 = vst [vmem:[#allocation2 + $0x100] sm:$0xf] %v636
        %644 = vst [vmem:[#allocation2 + $0x108] sm:$0xf] %v637
        %645 = vst [vmem:[#allocation2 + $0x110] sm:$0xf] %v638
        %646 = vst.msk [vmem:[#allocation2 + $0x118] sm:$0xf] %vm228, %v634
        %v647 = vld [vmem:[%s189] sm:$0xff]
        %v648 = vld [vmem:[%s189 + $0x8] sm:$0xff]
        %v651 = vcombine.low %v647, %v647
        %v652 = vcombine.low %v648, %v648
        %653 = vrot.lane.b32.xlu0 %v651, 66
        %v654 = vpop.permute.xlu0 %653
        %655 = vrot.lane.b32.xlu0 %v647, 66
        %v656 = vpop.permute.xlu0 %655
        %657 = vrot.lane.b32.xlu0 %v652, 66
        %v658 = vpop.permute.xlu0 %657
        %659 = vrot.lane.b32.xlu0 %v648, 66
        %v660 = vpop.permute.xlu0 %659
        %vm661 = vcmask 539648
        %v662 = vsel %vm661, %v654, %v656
        %v663 = vsel %vm661, %v656, %v658
        %v664 = vsel %vm661, %v658, %v660
        %669 = vst [vmem:[#allocation2 + $0x100] sm:$0xf0] %v662
        %670 = vst [vmem:[#allocation2 + $0x108] sm:$0xf0] %v663
        %671 = vst [vmem:[#allocation2 + $0x110] sm:$0xf0] %v664
        %672 = vst.msk [vmem:[#allocation2 + $0x118] sm:$0xf0] %vm255, %v660
        %v673 = vld [vmem:[%s189] sm:$0xff]
        %v674 = vld [vmem:[%s189 + $0x8] sm:$0xff]
        %v677 = vcombine.high %v673, %v673
        %v678 = vcombine.high %v674, %v674
        %679 = vrot.lane.b32.xlu0 %v673, 65
        %v680 = vpop.permute.xlu0 %679
        %681 = vrot.lane.b32.xlu0 %v677, 65
        %v682 = vpop.permute.xlu0 %681
        %683 = vrot.lane.b32.xlu0 %v674, 65
        %v684 = vpop.permute.xlu0 %683
        %685 = vrot.lane.b32.xlu0 %v678, 65
        %v686 = vpop.permute.xlu0 %685
        %vm687 = vcmask 531456
        %v688 = vsel %vm687, %v680, %v682
        %v689 = vsel %vm687, %v682, %v684
        %v690 = vsel %vm687, %v684, %v686
        %695 = vst [vmem:[#allocation2 + $0x120] sm:$0xf] %v688
        %696 = vst [vmem:[#allocation2 + $0x128] sm:$0xf] %v689
        %697 = vst [vmem:[#allocation2 + $0x130] sm:$0xf] %v690
        %698 = vst.msk [vmem:[#allocation2 + $0x138] sm:$0xf] %vm228, %v686
        %v699 = vld [vmem:[%s189] sm:$0xff]
        %v700 = vld [vmem:[%s189 + $0x8] sm:$0xff]
        %v703 = vcombine.low %v699, %v699
        %v704 = vcombine.low %v700, %v700
        %705 = vrot.lane.b32.xlu0 %v703, 64
        %v706 = vpop.permute.xlu0 %705
        %707 = vrot.lane.b32.xlu0 %v699, 64
        %v708 = vpop.permute.xlu0 %707
        %709 = vrot.lane.b32.xlu0 %v704, 64
        %v710 = vpop.permute.xlu0 %709
        %711 = vrot.lane.b32.xlu0 %v700, 64
        %v712 = vpop.permute.xlu0 %711
        %vm713 = vcmask 523264
        %v714 = vsel %vm713, %v706, %v708
        %v715 = vsel %vm713, %v708, %v710
        %v716 = vsel %vm713, %v710, %v712
        %721 = vst [vmem:[#allocation2 + $0x120] sm:$0xf0] %v714
        %722 = vst [vmem:[#allocation2 + $0x128] sm:$0xf0] %v715
        %723 = vst [vmem:[#allocation2 + $0x130] sm:$0xf0] %v716
        %724 = vst.msk [vmem:[#allocation2 + $0x138] sm:$0xf0] %vm255, %v712
        %v725 = vld [vmem:[%s189] sm:$0xff]
        %v726 = vld [vmem:[%s189 + $0x8] sm:$0xff]
        %v729 = vcombine.high %v725, %v725
        %v730 = vcombine.high %v726, %v726
        %731 = vrot.lane.b32.xlu0 %v725, 48
        %v732 = vpop.permute.xlu0 %731
        %733 = vrot.lane.b32.xlu0 %v729, 48
        %v734 = vpop.permute.xlu0 %733
        %735 = vrot.lane.b32.xlu0 %v726, 48
        %v736 = vpop.permute.xlu0 %735
        %737 = vrot.lane.b32.xlu0 %v730, 48
        %v738 = vpop.permute.xlu0 %737
        %vm739 = vcmask 392192
        %v740 = vsel %vm739, %v732, %v734
        %v741 = vsel %vm739, %v734, %v736
        %v742 = vsel %vm739, %v736, %v738
        %747 = vst [vmem:[#allocation2 + $0x140] sm:$0xf] %v740
        %748 = vst [vmem:[#allocation2 + $0x148] sm:$0xf] %v741
        %749 = vst [vmem:[#allocation2 + $0x150] sm:$0xf] %v742
        %750 = vst.msk [vmem:[#allocation2 + $0x158] sm:$0xf] %vm228, %v738
        %v751 = vld [vmem:[%s189] sm:$0xff]
        %v752 = vld [vmem:[%s189 + $0x8] sm:$0xff]
        %v755 = vcombine.low %v751, %v751
        %v756 = vcombine.low %v752, %v752
        %757 = vrot.lane.b32.xlu0 %v755, 47
        %v758 = vpop.permute.xlu0 %757
        %759 = vrot.lane.b32.xlu0 %v751, 47
        %v760 = vpop.permute.xlu0 %759
        %761 = vrot.lane.b32.xlu0 %v756, 47
        %v762 = vpop.permute.xlu0 %761
        %763 = vrot.lane.b32.xlu0 %v752, 47
        %v764 = vpop.permute.xlu0 %763
        %vm765 = vcmask 384000
        %v766 = vsel %vm765, %v758, %v760
        %v767 = vsel %vm765, %v760, %v762
        %v768 = vsel %vm765, %v762, %v764
        %773 = vst [vmem:[#allocation2 + $0x140] sm:$0xf0] %v766
        %774 = vst [vmem:[#allocation2 + $0x148] sm:$0xf0] %v767
        %775 = vst [vmem:[#allocation2 + $0x150] sm:$0xf0] %v768
        %776 = vst.msk [vmem:[#allocation2 + $0x158] sm:$0xf0] %vm255, %v764
        %v777 = vld [vmem:[%s189] sm:$0xff]
        %v778 = vld [vmem:[%s189 + $0x8] sm:$0xff]
        %v781 = vcombine.high %v777, %v777
        %v782 = vcombine.high %v778, %v778
        %783 = vrot.lane.b32.xlu0 %v777, 46
        %v784 = vpop.permute.xlu0 %783
        %785 = vrot.lane.b32.xlu0 %v781, 46
        %v786 = vpop.permute.xlu0 %785
        %787 = vrot.lane.b32.xlu0 %v778, 46
        %v788 = vpop.permute.xlu0 %787
        %789 = vrot.lane.b32.xlu0 %v782, 46
        %v790 = vpop.permute.xlu0 %789
        %vm791 = vcmask 375808
        %v792 = vsel %vm791, %v784, %v786
        %v793 = vsel %vm791, %v786, %v788
        %v794 = vsel %vm791, %v788, %v790
        %799 = vst [vmem:[#allocation2 + $0x160] sm:$0xf] %v792
        %800 = vst [vmem:[#allocation2 + $0x168] sm:$0xf] %v793
        %801 = vst [vmem:[#allocation2 + $0x170] sm:$0xf] %v794
        %802 = vst.msk [vmem:[#allocation2 + $0x178] sm:$0xf] %vm228, %v790
        %v803 = vld [vmem:[%s189] sm:$0xff]
        %v804 = vld [vmem:[%s189 + $0x8] sm:$0xff]
        %v807 = vcombine.low %v803, %v803
        %v808 = vcombine.low %v804, %v804
        %809 = vrot.lane.b32.xlu0 %v807, 45
        %v810 = vpop.permute.xlu0 %809
        %811 = vrot.lane.b32.xlu0 %v803, 45
        %v812 = vpop.permute.xlu0 %811
        %813 = vrot.lane.b32.xlu0 %v808, 45
        %v814 = vpop.permute.xlu0 %813
        %815 = vrot.lane.b32.xlu0 %v804, 45
        %v816 = vpop.permute.xlu0 %815
        %vm817 = vcmask 367616
        %v818 = vsel %vm817, %v810, %v812
        %v819 = vsel %vm817, %v812, %v814
        %v820 = vsel %vm817, %v814, %v816
        %825 = vst [vmem:[#allocation2 + $0x160] sm:$0xf0] %v818
        %826 = vst [vmem:[#allocation2 + $0x168] sm:$0xf0] %v819
        %827 = vst [vmem:[#allocation2 + $0x170] sm:$0xf0] %v820
        %828 = vst.msk [vmem:[#allocation2 + $0x178] sm:$0xf0] %vm255, %v816
        %v829 = vld [vmem:[%s189] sm:$0xff]
        %v830 = vld [vmem:[%s189 + $0x8] sm:$0xff]
        %v833 = vcombine.high %v829, %v829
        %v834 = vcombine.high %v830, %v830
        %835 = vrot.lane.b32.xlu0 %v829, 44
        %v836 = vpop.permute.xlu0 %835
        %837 = vrot.lane.b32.xlu0 %v833, 44
        %v838 = vpop.permute.xlu0 %837
        %839 = vrot.lane.b32.xlu0 %v830, 44
        %v840 = vpop.permute.xlu0 %839
        %841 = vrot.lane.b32.xlu0 %v834, 44
        %v842 = vpop.permute.xlu0 %841
        %vm843 = vcmask 359424
        %v844 = vsel %vm843, %v836, %v838
        %v845 = vsel %vm843, %v838, %v840
        %v846 = vsel %vm843, %v840, %v842
        %851 = vst [vmem:[#allocation2 + $0x180] sm:$0xf] %v844
        %852 = vst [vmem:[#allocation2 + $0x188] sm:$0xf] %v845
        %853 = vst [vmem:[#allocation2 + $0x190] sm:$0xf] %v846
        %854 = vst.msk [vmem:[#allocation2 + $0x198] sm:$0xf] %vm228, %v842
        %v855 = vld [vmem:[#allocation2] sm:$0xff]
        %v856 = vld [vmem:[#allocation2 + $0x8] sm:$0xff]
        %v857 = vld [vmem:[#allocation2 + $0x10] sm:$0xff]
        %v858 = vld [vmem:[#allocation2 + $0x18] sm:$0xff]
        %v859 = vld [vmem:[#allocation2 + $0x20] sm:$0xff]
        %v860 = vld [vmem:[#allocation2 + $0x28] sm:$0xff]
        %v861 = vld [vmem:[#allocation2 + $0x30] sm:$0xff]
        %v862 = vld [vmem:[#allocation2 + $0x38] sm:$0xff]
        %v863 = vld [vmem:[#allocation2 + $0x40] sm:$0xff]
        %v864 = vld [vmem:[#allocation2 + $0x48] sm:$0xff]
        %v865 = vld [vmem:[#allocation2 + $0x50] sm:$0xff]
        %v866 = vld [vmem:[#allocation2 + $0x58] sm:$0xff]
        %v867 = vld [vmem:[#allocation2 + $0x60] sm:$0xff]
        %v868 = vld [vmem:[#allocation2 + $0x68] sm:$0xff]
        %v869 = vld [vmem:[#allocation2 + $0x70] sm:$0xff]
        %v870 = vld [vmem:[#allocation2 + $0x78] sm:$0xff]
        %v871 = vld [vmem:[#allocation2 + $0x80] sm:$0xff]
        %v872 = vld [vmem:[#allocation2 + $0x88] sm:$0xff]
        %v873 = vld [vmem:[#allocation2 + $0x90] sm:$0xff]
        %v874 = vld [vmem:[#allocation2 + $0x98] sm:$0xff]
        %v875 = vld [vmem:[#allocation2 + $0xa0] sm:$0xff]
        %v876 = vld [vmem:[#allocation2 + $0xa8] sm:$0xff]
        %v877 = vld [vmem:[#allocation2 + $0xb0] sm:$0xff]
        %v878 = vld [vmem:[#allocation2 + $0xb8] sm:$0xff]
        %v879 = vld [vmem:[#allocation2 + $0xc0] sm:$0xff]
        %v880 = vld [vmem:[#allocation2 + $0xc8] sm:$0xff]
        %v881 = vld [vmem:[#allocation2 + $0xd0] sm:$0xff]
        %v882 = vld [vmem:[#allocation2 + $0xd8] sm:$0xff]
        %v883 = vld [vmem:[#allocation2 + $0xe0] sm:$0xff]
        %v884 = vld [vmem:[#allocation2 + $0xe8] sm:$0xff]
        %v885 = vld [vmem:[#allocation2 + $0xf0] sm:$0xff]
        %v886 = vld [vmem:[#allocation2 + $0xf8] sm:$0xff]
        %v887 = vld [vmem:[#allocation2 + $0x100] sm:$0xff]
        %v888 = vld [vmem:[#allocation2 + $0x108] sm:$0xff]
        %v889 = vld [vmem:[#allocation2 + $0x110] sm:$0xff]
        %v890 = vld [vmem:[#allocation2 + $0x118] sm:$0xff]
        %v891 = vld [vmem:[#allocation2 + $0x120] sm:$0xff]
        %v892 = vld [vmem:[#allocation2 + $0x128] sm:$0xff]
        %v893 = vld [vmem:[#allocation2 + $0x130] sm:$0xff]
        %v894 = vld [vmem:[#allocation2 + $0x138] sm:$0xff]
        %v895 = vld [vmem:[#allocation2 + $0x140] sm:$0xff]
        %v896 = vld [vmem:[#allocation2 + $0x148] sm:$0xff]
        %v897 = vld [vmem:[#allocation2 + $0x150] sm:$0xff]
        %v898 = vld [vmem:[#allocation2 + $0x158] sm:$0xff]
        %v899 = vld [vmem:[#allocation2 + $0x160] sm:$0xff]
        %v900 = vld [vmem:[#allocation2 + $0x168] sm:$0xff]
        %v901 = vld [vmem:[#allocation2 + $0x170] sm:$0xff]
        %v902 = vld [vmem:[#allocation2 + $0x178] sm:$0xff]
        %v903 = vld [vmem:[#allocation2 + $0x180] sm:$0xf]
        %v904 = vld [vmem:[#allocation2 + $0x188] sm:$0xf]
        %v905 = vld [vmem:[#allocation2 + $0x190] sm:$0xf]
        %v906 = vld [vmem:[#allocation2 + $0x198] sm:$0xf]
        %vm907 = vcmask 818176
        %v909 = vsel %vm907, %v214, 0
        %vm911 = vcmask 1043456
        %v913 = vsel %vm911, %v903, 0
        %v916 = vsel %vm911, %v904, 0
        %v919 = vsel %vm911, %v905, 0
        %v922 = vsel %vm911, %v906, 0
        %924 = vmatprep.subr.mxu0 0.0
        %925 = vmatpush1.msra.mxu0 0.0
        %926 = vmatprep.subr.mxu0 0.0
        %927 = vmatpush1.msra.mxu0 0.0
        %928 = vmatprep.subr.mxu0 0.0
        %929 = vmatpush1.msra.mxu0 0.0
        %930 = vmatprep.subr.mxu0 %v916
        %931 = vmatpush1.msra.mxu0 %v913
        %932 = vmatprep.subr.mxu0 %v900
        %933 = vmatpush1.msra.mxu0 %v899
        %934 = vmatprep.subr.mxu0 %v896
        %935 = vmatpush1.msra.mxu0 %v895
        %936 = vmatprep.subr.mxu0 %v892
        %937 = vmatpush1.msra.mxu0 %v891
        %938 = vmatprep.subr.mxu0 %v888
        %939 = vmatpush1.msra.mxu0 %v887
        %940 = vmatprep.subr.mxu0 %v884
        %941 = vmatpush1.msra.mxu0 %v883
        %942 = vmatprep.subr.mxu0 %v880
        %943 = vmatpush1.msra.mxu0 %v879
        %944 = vmatprep.subr.mxu0 %v876
        %945 = vmatpush1.msra.mxu0 %v875
        %946 = vmatprep.subr.mxu0 %v872
        %947 = vmatpush1.msra.mxu0 %v871
        %948 = vmatprep.subr.mxu0 %v868
        %949 = vmatpush1.msra.mxu0 %v867
        %950 = vmatprep.subr.mxu0 %v864
        %951 = vmatpush1.msra.mxu0 %v863
        %952 = vmatprep.subr.mxu0 %v860
        %953 = vmatpush1.msra.mxu0 %v859
        %954 = vmatprep.subr.mxu0 %v856
        %955 = vmatpush1.msra.mxu0 %v855
        %956 = vmatprep.subr.mxu0 0.0
        %957 = vmatpush2.msra.mxu0 0.0
        %958 = vmatprep.subr.mxu0 0.0
        %959 = vmatpush2.msra.mxu0 0.0
        %960 = vmatprep.subr.mxu0 0.0
        %961 = vmatpush2.msra.mxu0 0.0
        %962 = vmatprep.subr.mxu0 0.0
        %963 = vmatpush2.msra.mxu0 0.0
        %964 = vmatprep.subr.mxu0 0.0
        %965 = vmatpush2.msra.mxu0 0.0
        %966 = vmatprep.subr.mxu0 0.0
        %967 = vmatpush2.msra.mxu0 0.0
        %968 = vmatprep.subr.mxu0 0.0
        %969 = vmatpush2.msra.mxu0 0.0
        %970 = vmatprep.subr.mxu0 0.0
        %971 = vmatpush2.msra.mxu0 0.0
        %972 = vmatprep.subr.mxu0 0.0
        %973 = vmatpush2.msra.mxu0 0.0
        %974 = vmatprep.subr.mxu0 0.0
        %975 = vmatpush2.msra.mxu0 0.0
        %976 = vmatprep.subr.mxu0 0.0
        %977 = vmatpush2.msra.mxu0 0.0
        %978 = vmatprep.subr.mxu0 0.0
        %979 = vmatpush2.msra.mxu0 0.0
        %980 = vmatprep.subr.mxu0 0.0
        %981 = vmatpush2.msra.mxu0 0.0
        %982 = vmatprep.subr.mxu0 0.0
        %983 = vmatpush2.msra.mxu0 0.0
        %984 = vmatprep.subr.mxu0 0.0
        %985 = vmatpush2.msra.mxu0 0.0
        %986 = vmatprep.subr.mxu0 0.0
        %987 = vmatpush2.msra.mxu0 0.0
        %988 = vmatprep.mubr.f32.mxu0 0.0
        %989 = vmatmul.mubr.f32.gmra.mxu0 %v909
        %v990 = vpop.f32.mrf.mxu0
        %v991 = vadd.f32 0.0, %v990
        %v992 = vpop.f32.mrf.mxu0
        %v993 = vadd.f32 0.0, %v992
        %994 = vdwg.mxu0
        %995 = vmatprep.subr.mxu0 0.0
        %996 = vmatpush1.msra.mxu0 0.0
        %997 = vmatprep.subr.mxu0 0.0
        %998 = vmatpush1.msra.mxu0 0.0
        %999 = vmatprep.subr.mxu0 0.0
        %1000 = vmatpush1.msra.mxu0 0.0
        %1001 = vmatprep.subr.mxu0 %v922
        %1002 = vmatpush1.msra.mxu0 %v919
        %1003 = vmatprep.subr.mxu0 %v902
        %1004 = vmatpush1.msra.mxu0 %v901
        %1005 = vmatprep.subr.mxu0 %v898
        %1006 = vmatpush1.msra.mxu0 %v897
        %1007 = vmatprep.subr.mxu0 %v894
        %1008 = vmatpush1.msra.mxu0 %v893
        %1009 = vmatprep.subr.mxu0 %v890
        %1010 = vmatpush1.msra.mxu0 %v889
        %1011 = vmatprep.subr.mxu0 %v886
        %1012 = vmatpush1.msra.mxu0 %v885
        %1013 = vmatprep.subr.mxu0 %v882
        %1014 = vmatpush1.msra.mxu0 %v881
        %1015 = vmatprep.subr.mxu0 %v878
        %1016 = vmatpush1.msra.mxu0 %v877
        %1017 = vmatprep.subr.mxu0 %v874
        %1018 = vmatpush1.msra.mxu0 %v873
        %1019 = vmatprep.subr.mxu0 %v870
        %1020 = vmatpush1.msra.mxu0 %v869
        %1021 = vmatprep.subr.mxu0 %v866
        %1022 = vmatpush1.msra.mxu0 %v865
        %1023 = vmatprep.subr.mxu0 %v862
        %1024 = vmatpush1.msra.mxu0 %v861
        %1025 = vmatprep.subr.mxu0 %v858
        %1026 = vmatpush1.msra.mxu0 %v857
        %1027 = vmatprep.subr.mxu0 0.0
        %1028 = vmatpush2.msra.mxu0 0.0
        %1029 = vmatprep.subr.mxu0 0.0
        %1030 = vmatpush2.msra.mxu0 0.0
        %1031 = vmatprep.subr.mxu0 0.0
        %1032 = vmatpush2.msra.mxu0 0.0
        %1033 = vmatprep.subr.mxu0 0.0
        %1034 = vmatpush2.msra.mxu0 0.0
        %1035 = vmatprep.subr.mxu0 0.0
        %1036 = vmatpush2.msra.mxu0 0.0
        %1037 = vmatprep.subr.mxu0 0.0
        %1038 = vmatpush2.msra.mxu0 0.0
        %1039 = vmatprep.subr.mxu0 0.0
        %1040 = vmatpush2.msra.mxu0 0.0
        %1041 = vmatprep.subr.mxu0 0.0
        %1042 = vmatpush2.msra.mxu0 0.0
        %1043 = vmatprep.subr.mxu0 0.0
        %1044 = vmatpush2.msra.mxu0 0.0
        %1045 = vmatprep.subr.mxu0 0.0
        %1046 = vmatpush2.msra.mxu0 0.0
        %1047 = vmatprep.subr.mxu0 0.0
        %1048 = vmatpush2.msra.mxu0 0.0
        %1049 = vmatprep.subr.mxu0 0.0
        %1050 = vmatpush2.msra.mxu0 0.0
        %1051 = vmatprep.subr.mxu0 0.0
        %1052 = vmatpush2.msra.mxu0 0.0
        %1053 = vmatprep.subr.mxu0 0.0
        %1054 = vmatpush2.msra.mxu0 0.0
        %1055 = vmatprep.subr.mxu0 0.0
        %1056 = vmatpush2.msra.mxu0 0.0
        %1057 = vmatprep.subr.mxu0 0.0
        %1058 = vmatpush2.msra.mxu0 0.0
        %1059 = vmatprep.mubr.f32.mxu0 0.0
        %1060 = vmatmul.mubr.f32.gmra.mxu0 %v909
        %v1061 = vpop.f32.mrf.mxu0
        %v1062 = vadd.f32 0.0, %v1061
        %v1063 = vpop.f32.mrf.mxu0
        %v1064 = vadd.f32 0.0, %v1063
        %1065 = vdwg.mxu0
        %1067 = vset.pattern.permute.xlu0 0
        %1068 = vperm.xlu0 %1067, %v215
        %v1069 = vpop.permute.xlu0 %1068
        %v1071 = vmul.f32 %v991, %v1069
        %v1072 = vmul.f32 %v993, %v1069
        %v1073 = vmul.f32 %v1062, %v1069
        %v1074 = vmul.f32 %v1064, %v1069
        %1076 = vset.pattern.permute.xlu0 0
        %1077 = vperm.xlu0 %1076, %v216
        %v1078 = vpop.permute.xlu0 %1077
        %v1080 = vadd.f32 %v1071, %v1078
        %v1081 = vadd.f32 %v1072, %v1078
        %v1082 = vadd.f32 %v1073, %v1078
        %v1083 = vadd.f32 %v1074, %v1078
        %v1084 = vmax.f32 %v1080, 0.0
        %v1085 = vmax.f32 %v1081, 0.0
        %v1086 = vmax.f32 %v1082, 0.0
        %v1087 = vmax.f32 %v1083, 0.0
        %1088 = vst [vmem:[%s213] sm:$0xff] %v1084
        %1089 = vst [vmem:[%s213 + $0x8] sm:$0xff] %v1085
        %1090 = vst [vmem:[%s213 + $0x10] sm:$0xff] %v1086
        %vm1091 = vcmask 130048
        %1092 = vst.msk [vmem:[%s213 + $0x18] sm:$0xff] %vm1091, %v1087
        %s1093 = sand.u32 %s118, 1
        %s1094 = scalar_lea.sflag [#allocation5], %s1093
        %s1095 = sand.u32 %s118, 1
        %s1096 = smul.addr %s1095, 32
        %s1097 = scalar_lea.vmem [#allocation6], %s1096
        // Predicated region
        $region41: #{tpu_custom_call.1} parent=35 // pred_check
          %p1098 = pneg %p128
        $region42: #{tpu_custom_call.1} parent=35 // pred_check_branch
          %1100 = sbr.rel (%p1098) target = $region44
        $region43: #{tpu_custom_call.1} parent=35 // pred_region
          %s1102 = ssub.s32 512, 512
          %1103 = vsyncadd %s1094, %s1102
          %s1104 = smul.addr %s21, 4
          %s1105 = smul.addr %s1104, 128
          %s1106 = scalar_lea.hbm %s4, %s1105
          %s1108 = sshll.u32 %s1097, 4
          %s1109 = int_to_ptr.vmem [resolvable:$true] %s1108
          %1111 = dma.vmem_to_hbm [thread:$0]  %s1109, 512, %s1106, %s1094
        $region44: #{tpu_custom_call.1} parent=35 // pred_fallthru
          _
      $region36: #{tpu_custom_call.1} parent=5 // pred_fallthru
        _
      %p1112 = scmp.le.s32.totalorder 2, %s16
      // Predicated region
      $region45: #{tpu_custom_call.1} parent=5 // pred_check
        %p1113 = pneg %p1112
      $region46: #{tpu_custom_call.1} parent=5 // pred_check_branch
        %1115 = sbr.rel (%p1113) target = $region48
      $region47: #{tpu_custom_call.1} parent=5 // pred_region
        %s1116 = ssub.s32 %s16, 2
        // Predicated region
        $region49: #{tpu_custom_call.1} parent=47 // pred_check
          %p1117 = pneg %p134
        $region50: #{tpu_custom_call.1} parent=47 // pred_check_branch
          %1119 = sbr.rel (%p1117) target = $region52
        $region51: #{tpu_custom_call.1} parent=47 // pred_region
          %s1120 = sand.u32 %s119, 1
          %s1121 = scalar_lea.sflag [#allocation5], %s1120
          %s1122 = sand.u32 %s119, 1
          %s1123 = smul.addr %s1122, 32
          %s1124 = scalar_lea.vmem [#allocation6], %s1123
          %1125 = dma.done %s1121, 512
        $region52: #{tpu_custom_call.1} parent=47 // pred_fallthru
          _
      $region48: #{tpu_custom_call.1} parent=5 // pred_fallthru
        _
    $region6: #{tpu_custom_call.1} parent=1 // loop_footer
      %s20 = sadd.s32 1, %s16
    $region7: #{tpu_custom_call.1} parent=1 // loop_footer_branch
      %15 = sbr.rel target = $region3
    $region8: #{tpu_custom_call.1} parent=1 // loop_exit
      _
    %1126 = vsyncpa [#allocation4], 1
    %s1127 = scalar_lea.sflag [#allocation4], 1
    %1128 = vsyncpa %s1127, 1
    %1129 = vsyncpa [#allocation5], 1
    %s1130 = scalar_lea.sflag [#allocation5], 1
    %1131 = vsyncpa %s1130, 1

</llo_original>
